<compile_context>
chip_gen: v5e
topology: v5e:2x2
jax: 0.10.0
libtpu: 0.0.40
codegen_flags: <defaults>
</compile_context>

<pallas_src>
import functools

import jax
import jax.numpy as jnp
from jax import lax
from jax.experimental import pallas as pl
from jax.experimental.pallas import tpu as pltpu

LANE = 128
MASK_VALUE = -1e30  # finite mask value (robust vs. exp(-inf - -inf) NaNs)


def _qkv_proj_kernel(x_ref, w_ref, qkv_ref):
    # x_ref: (tp, C)   w_ref: (C, 3*D_pad)   qkv_ref: (tp, 3*D_pad)
    qkv_ref[...] = jnp.dot(
        x_ref[...], w_ref[...], preferred_element_type=jnp.float32
    ).astype(qkv_ref.dtype)


def _attn_kernel(q_ref, k_ref, v_ref, o_ref, m_sc, l_sc, acc_sc, *, tq, tk):
    # q_ref: (tq, D_pad) bf16   k_ref/v_ref: (tk, D_pad) bf16
    # o_ref: (tq, D_pad)        m_sc/l_sc: (tq, 1) f32   acc_sc: (tq, D_pad) f32
    qi = pl.program_id(1)
    ki = pl.program_id(2)
    n_k = pl.num_programs(2)

    @pl.when(ki == 0)
    def _init():
        m_sc[...] = jnp.full_like(m_sc, -jnp.inf)
        l_sc[...] = jnp.zeros_like(l_sc)
        acc_sc[...] = jnp.zeros_like(acc_sc)

    def _scores():
        # (tq, tk) = q @ k.T ; bf16 operands, f32 accumulation (scale already
        # folded into Wq at projection time).
        return lax.dot_general(
            q_ref[...], k_ref[...],
            dimension_numbers=(((1,), (1,)), ((), ())),
            preferred_element_type=jnp.float32)

    def _update(s):
        m_prev = m_sc[...]
        m_new = jnp.maximum(m_prev, s.max(axis=-1, keepdims=True))
        alpha = jnp.exp(m_prev - m_new)
        p = jnp.exp(s - m_new)
        l_sc[...] = alpha * l_sc[...] + p.sum(axis=-1, keepdims=True)
        acc_sc[...] = alpha * acc_sc[...] + jnp.dot(
            p.astype(v_ref.dtype), v_ref[...],
            preferred_element_type=jnp.float32)
        m_sc[...] = m_new

    q_lo = qi * tq
    q_hi = qi * tq + (tq - 1)
    k_lo = ki * tk
    k_hi = ki * tk + (tk - 1)

    block_visible = k_lo <= q_hi   # at least one unmasked (col <= row) entry
    block_full = k_hi <= q_lo      # fully unmasked interior block

    @pl.when(block_full)
    def _interior():
        _update(_scores())

    @pl.when(jnp.logical_and(block_visible, jnp.logical_not(block_full)))
    def _diagonal():
        s = _scores()
        row = q_lo + lax.broadcasted_iota(jnp.int32, (tq, 1), 0)
        col = k_lo + lax.broadcasted_iota(jnp.int32, (1, tk), 1)
        s = jnp.where(col <= row, s, MASK_VALUE)
        _update(s)

    @pl.when(ki == n_k - 1)
    def _finalize():
        o_ref[...] = (acc_sc[...] *
                      pl.reciprocal(l_sc[...], approx=True)).astype(o_ref.dtype)


def head_forward(x, wq, wk, wv, *, tq=256, tk=256, compute_dtype=jnp.bfloat16):
    """Single-head causal attention. x: (B, T, n_embed); wq/wk/wv: (head_size, n_embed)."""
    B, T, C = x.shape
    D = wq.shape[0]
    D_pad = max(LANE, ((D + LANE - 1) // LANE) * LANE)  # lane-dense head dim
    scale = float(D) ** -0.5

    tq = min(tq, T)
    tk = min(tk, T)
    assert T % tq == 0 and T % tk == 0, "seq len must divide the chosen tiles"
    tp = min(256, T)
    assert T % tp == 0

    # Pack [Wq*scale | Wk | Wv] into one lane-dense (C, 3*D_pad) matrix
    # ((in, out) layout: y = x @ W.T in PyTorch == x @ W_packed here).
    w_all = jnp.zeros((C, 3 * D_pad), jnp.float32)
    w_all = w_all.at[:, 0:D].set(wq.T.astype(jnp.float32) * scale)
    w_all = w_all.at[:, D_pad:D_pad + D].set(wk.T.astype(jnp.float32))
    w_all = w_all.at[:, 2 * D_pad:2 * D_pad + D].set(wv.T.astype(jnp.float32))
    w_all = w_all.astype(compute_dtype)
    x_c = x.astype(compute_dtype)

    # ---- Stage 1: fused QKV projection, computed once ----
    qkv = pl.pallas_call(
        _qkv_proj_kernel,
        out_shape=jax.ShapeDtypeStruct((B, T, 3 * D_pad), compute_dtype),
        grid=(B, T // tp),
        in_specs=[
            pl.BlockSpec((None, tp, C), lambda b, ti: (b, ti, 0)),
            pl.BlockSpec((C, 3 * D_pad), lambda b, ti: (0, 0)),  # resident weights
        ],
        out_specs=pl.BlockSpec((None, tp, 3 * D_pad), lambda b, ti: (b, ti, 0)),
        compiler_params=pltpu.CompilerParams(
            dimension_semantics=("parallel", "parallel")),
    )(x_c, w_all)

    # ---- Stage 2: flash attention over precomputed, lane-dense q/k/v ----
    def q_map(b, qi, ki):
        return (b, qi, 0)

    def kv_map(block):
        def _map(b, qi, ki):
            # Clamp to the causal bound: fully-masked future blocks repeat the
            # previous block index, so Pallas skips their DMA entirely.
            last_needed = (qi * tq + tq - 1) // tk
            return (b, jnp.minimum(ki, last_needed), block)
        return _map

    # VMEM budget derived from the actual tile sizes (safe for v7x's 64 MiB).
    isz = jnp.dtype(compute_dtype).itemsize
    osz = jnp.dtype(x.dtype).itemsize
    vmem_bytes = (
        2 * tq * D_pad * isz            # q tile, double-buffered
        + 2 * 2 * tk * D_pad * isz      # k + v tiles, double-buffered
        + 2 * tq * D_pad * osz          # output tile, double-buffered
        + tq * D_pad * 4                # acc scratch (f32)
        + 2 * tq * LANE * 4             # m / l scratch (lane-padded)
    )
    vmem_limit = int(min(64 * 1024 * 1024, max(4 * vmem_bytes, 8 * 1024 * 1024)))

    kernel = functools.partial(_attn_kernel, tq=tq, tk=tk)
    out_pad = pl.pallas_call(
        kernel,
        out_shape=jax.ShapeDtypeStruct((B, T, D_pad), x.dtype),
        grid=(B, T // tq, T // tk),
        in_specs=[
            pl.BlockSpec((None, tq, D_pad), q_map),       # q  slab of qkv
            pl.BlockSpec((None, tk, D_pad), kv_map(1)),   # k  slab of qkv
            pl.BlockSpec((None, tk, D_pad), kv_map(2)),   # v  slab of qkv
        ],
        out_specs=pl.BlockSpec((None, tq, D_pad), lambda b, qi, ki: (b, qi, 0)),
        scratch_shapes=[
            pltpu.VMEM((tq, 1), jnp.float32),       # running max m
            pltpu.VMEM((tq, 1), jnp.float32),       # running sum l
            pltpu.VMEM((tq, D_pad), jnp.float32),   # output accumulator
        ],
        compiler_params=pltpu.CompilerParams(
            dimension_semantics=("parallel", "parallel", "arbitrary"),
            vmem_limit_bytes=vmem_limit),
    )(qkv, qkv, qkv)

    # Drop the lane padding (padded v columns are exactly zero).
    return out_pad[..., :D]


def reference_head(x, wq, wk, wv):
    q = x @ wq.T
    k = x @ wk.T
    v = x @ wv.T
    D = q.shape[-1]
    s = (q @ jnp.swapaxes(k, -1, -2)) * (float(D) ** -0.5)
    T = x.shape[1]
    mask = jnp.tril(jnp.ones((T, T), dtype=bool))
    s = jnp.where(mask, s, -jnp.inf)
    w = jax.nn.softmax(s, axis=-1)
    return w @ v


if __name__ == "__main__":
    def make_case(k, B, T, n_embed, n_heads):
        head_size = n_embed // n_heads
        kx, kq, kk, kv = jax.random.split(k, 4)
        x = jax.random.normal(kx, (B, T, n_embed), dtype=jnp.float32)
        bound = 1.0 / (n_embed ** 0.5)
        wq = jax.random.uniform(kq, (head_size, n_embed), jnp.float32, -bound, bound)
        wk = jax.random.uniform(kk, (head_size, n_embed), jnp.float32, -bound, bound)
        wv = jax.random.uniform(kv, (head_size, n_embed), jnp.float32, -bound, bound)
        return x, wq, wk, wv

    key = jax.random.PRNGKey(0)
    k0, k1 = jax.random.split(key)

    # Primary small config consistent with the module: n_embed=32, n_heads=4 -> head_size=8.
    x, wq, wk, wv = make_case(k0, B=2, T=8, n_embed=32, n_heads=4)
    out = jax.block_until_ready(head_forward(x, wq, wk, wv))
    ref = reference_head(x, wq, wk, wv)
    assert out.shape == ref.shape
    assert jnp.allclose(out, ref, atol=5e-2, rtol=5e-2), "mismatch (small case)"

    # Secondary multi-tile case: exercises interior / diagonal / clamped-skip paths.
    x2, wq2, wk2, wv2 = make_case(k1, B=2, T=256, n_embed=64, n_heads=4)
    out2 = jax.block_until_ready(head_forward(x2, wq2, wk2, wv2, tq=128, tk=128))
    ref2 = reference_head(x2, wq2, wk2, wv2)
    assert out2.shape == ref2.shape
    assert jnp.allclose(out2, ref2, atol=5e-2, rtol=5e-2), "mismatch (multi-tile case)"

    print("KERNEL_OK")
</pallas_src>

<mosaic_0001>
module attributes {stable_mosaic.version = 11 : i64} {
  func.func @_qkv_proj_kernel(%arg0: i32, %arg1: i32, %arg2: memref<1x8x32xbf16, #tpu.memory_space<vmem>>, %arg3: memref<32x384xbf16, #tpu.memory_space<vmem>>, %arg4: memref<1x8x384xbf16, #tpu.memory_space<vmem>>) attributes {dimension_semantics = [#tpu.dimension_semantics<parallel>, #tpu.dimension_semantics<parallel>], iteration_bounds = array<i64: 2, 1>, scalar_prefetch = 0 : i64, scratch_operands = 0 : i64, tpu.core_type = #tpu.core_type<tc>, window_params = [{transform_indices = @transform_0, window_bounds = array<i64: 1, 8, 32>}, {pipeline_mode = #tpu.pipeline_mode<synchronous>, transform_indices = @transform_1, window_bounds = array<i64: 32, 384>}, {transform_indices = @transform_2, window_bounds = array<i64: 1, 8, 384>}]} {
    %c0 = arith.constant 0 : index
    %c0_0 = arith.constant 0 : index
    %c0_1 = arith.constant 0 : index
    %0 = vector.load %arg2[%c0, %c0_0, %c0_1] : memref<1x8x32xbf16, #tpu.memory_space<vmem>>, vector<1x8x32xbf16>
    %1 = vector.shape_cast %0 : vector<1x8x32xbf16> to vector<8x32xbf16>
    %c0_2 = arith.constant 0 : index
    %c0_3 = arith.constant 0 : index
    %2 = vector.load %arg3[%c0_2, %c0_3] : memref<32x384xbf16, #tpu.memory_space<vmem>>, vector<32x384xbf16>
    %cst = arith.constant dense<0.000000e+00> : vector<8x384xf32>
    %3 = tpu.matmul %1, %2, %cst {dimension_numbers = #tpu.dot_dimension_numbers<[1], [0], [0], [1], [0, 0, 1, 1], [], []>} : vector<8x32xbf16>, vector<32x384xbf16>, vector<8x384xf32> -> vector<8x384xf32>
    %4 = arith.truncf %3 : vector<8x384xf32> to vector<8x384xbf16>
    %c0_4 = arith.constant 0 : index
    %c0_5 = arith.constant 0 : index
    %c0_6 = arith.constant 0 : index
    %5 = vector.load %arg4[%c0_4, %c0_5, %c0_6] : memref<1x8x384xbf16, #tpu.memory_space<vmem>>, vector<1x8x384xbf16>
    %6 = vector.shape_cast %5 : vector<1x8x384xbf16> to vector<8x384xbf16>
    %7 = vector.shape_cast %4 : vector<8x384xbf16> to vector<1x8x384xbf16>
    tpu.vector_store %arg4[%c0_4, %c0_5, %c0_6], %7 {strides = array<i32>} : memref<1x8x384xbf16, #tpu.memory_space<vmem>>, vector<1x8x384xbf16>,
    return
  }
  func.func @transform_0(%arg0: i32, %arg1: i32) -> (i32, i32, i32) {
    %c0_i32 = arith.constant 0 : i32
    %c0_i32_0 = arith.constant 0 : i32
    return %arg0, %arg1, %c0_i32 : i32, i32, i32
  }
  func.func @transform_1(%arg0: i32, %arg1: i32) -> (i32, i32) {
    %c0_i32 = arith.constant 0 : i32
    %c0_i32_0 = arith.constant 0 : i32
    %c0_i32_1 = arith.constant 0 : i32
    return %c0_i32, %c0_i32_0 : i32, i32
  }
  func.func @transform_2(%arg0: i32, %arg1: i32) -> (i32, i32, i32) {
    %c0_i32 = arith.constant 0 : i32
    %c0_i32_0 = arith.constant 0 : i32
    return %arg0, %arg1, %c0_i32 : i32, i32, i32
  }
}

</mosaic_0001>

<llo_original>
// kernel: tpu_custom_call.1
$region0: #{tpu_custom_call.1}
  #allocation0 [shape = 'u32[]', space=smem, size = 0x4, offset = 0x4, fixed_abs, tag = 'smem constant byte address 0x4 - core index']
  #allocation1 [shape = 'u32[72,128]{1,0:T(1,128)}', space=vmem, size = 0x9000, scoped, tag = 'internal scratch']
  %s0 = inlined_call_operand.hbm [shape: bf16[2,8,32], index: 0, kind: input, shape index: {}]
  %s1 = inlined_call_operand.hbm [shape: bf16[32,384], index: 1, kind: input, shape index: {}]
  %s2 = inlined_call_operand.hbm [shape: bf16[2,8,384], index: 2, kind: output, shape index: {}]
  %s3 = sld [smem:[#allocation0]]
  $region49: #{tpu_custom_call.1} parent=0
    _
  %s5 = ssub.s32 1, %s3
  %s6 = scalar_select 0, %s5, %s3
  $region1: #{tpu_custom_call.1} parent=0
    #allocation2 [shape = 'u8[4096]{0}', space=vmem, size = 0x1000, scoped, tag = 'input window, operand 0']
    #allocation3 [shape = 's32[2]{0}', space=sflag, size = 0x8, scoped, tag = 'scoped memory for tpu_custom_call.1']
    #allocation4 [shape = 's32[2]{0}', space=sflag, size = 0x8, scoped, tag = 'scoped memory for tpu_custom_call.1']
    #allocation5 [shape = 'u8[24576]{0}', space=vmem, size = 0x6000, scoped, tag = 'input window, operand 1, single buffered']
    #allocation6 [shape = 's32[1]{0}', space=sflag, size = 0x4, scoped, tag = 'scoped memory for tpu_custom_call.1']
    #allocation7 [shape = 'u8[12288]{0}', space=vmem, size = 0x3000, scoped, tag = 'output window, operand 0']
    %7 = vsyncpa [#allocation3], 0
    %s8 = scalar_lea.sflag [#allocation3], 1
    %9 = vsyncpa %s8, 0
    %10 = vsyncpa [#allocation6], 0
    %11 = vsyncpa [#allocation4], 0
    %s12 = scalar_lea.sflag [#allocation4], 1
    %13 = vsyncpa %s12, 0
    loop: start=0, step=1, limit=4
    $region2: #{tpu_custom_call.1} parent=1 // loop_pre_header
      _
    $region3: #{tpu_custom_call.1} parent=1 // loop_header
      %s15 = sphi 0, %s19
      %p16 = scmp.ge.s32.totalorder %s15, 4
      %s22 = sphi 0, %s34
      %s23 = sphi 0, %s30
      %s24 = sphi 0, %s22
      %s25 = sphi 0, %s23
      %s26 = sphi 0, %s24
      %s27 = sphi 0, %s25
      %s39 = sphi 0, %s41
      %s42 = sphi 0, %s39
      %s43 = sphi 0, %s42
      %s59 = sphi 0, %s43
      %s63 = sphi 0, %s63
      %s65 = sphi 0, %s63
      %s66 = sphi 0, %s65
      %s80 = sphi 0, %s66
      %s88 = sphi 0, %s90
      %s91 = sphi 0, %s88
      %s92 = sphi 0, %s91
      %s108 = sphi 0, %s92
    $region4: #{tpu_custom_call.1} parent=1 // loop_header_branch
      %18 = sbr.rel (%p16) target = $region8
    $region5: #{tpu_custom_call.1} parent=1 // loop_body
      %s20 = ssub.s32 %s15, 1
      %s21 = ssub.s32 %s15, 2
      %s28 = sadd.s32 1, %s23
      %p29 = scmp.ge.s32.totalorder %s28, 1
      %s30 = scalar_select %p29, 0, %s28
      %s31 = sadd.s32 1, %s22
      %s32 = scalar_select %p29, %s31, %s22
      %p33 = scmp.ge.s32.totalorder %s32, 2
      %s34 = scalar_select %p33, 0, %s32
      %s35 = ssub.s32 %s22, %s34
      %s36 = ssub.s32 %s23, %s30
      %s37 = sor.u32 %s35, %s36
      %p38 = scmp.eq.s32.totalorder %s37, 0
      %s40 = sadd.s32 %s39, 1
      %s41 = scalar_select %p38, %s39, %s40
      %p44 = pneg %p38
      %p45 = scmp.eq.s32.totalorder %s15, 1
      %p46 = por %p44, %p45
      %p47 = scmp.ne.s32.totalorder %s39, %s42
      %p48 = scmp.eq.s32.totalorder %s15, 0
      %p49 = por %p47, %p48
      %p50 = scmp.ne.s32.totalorder %s39, %s42
      %p51 = scmp.eq.s32.totalorder %s20, 1
      %p52 = por %p50, %p51
      %p53 = scmp.ne.s32.totalorder %s42, %s43
      %p54 = scmp.eq.s32.totalorder %s20, 0
      %p55 = por %p53, %p54
      %p56 = scmp.ne.s32.totalorder %s42, %s43
      %p57 = scmp.eq.s32.totalorder %s21, 1
      %p58 = por %p56, %p57
      %p60 = scmp.ne.s32.totalorder %s43, %s59
      %p61 = scmp.eq.s32.totalorder %s21, 0
      %p62 = por %p60, %p61
      %s64 = sadd.s32 %s63, 1
      %p67 = scmp.eq.s32.totalorder %s15, 1
      %p68 = scmp.ne.s32.totalorder %s63, %s65
      %p69 = scmp.eq.s32.totalorder %s15, 0
      %p70 = por %p68, %p69
      %p71 = scmp.ne.s32.totalorder %s63, %s65
      %p72 = scmp.eq.s32.totalorder %s20, 1
      %p73 = por %p71, %p72
      %p74 = scmp.ne.s32.totalorder %s65, %s66
      %p75 = scmp.eq.s32.totalorder %s20, 0
      %p76 = por %p74, %p75
      %p77 = scmp.ne.s32.totalorder %s65, %s66
      %p78 = scmp.eq.s32.totalorder %s21, 1
      %p79 = por %p77, %p78
      %p81 = scmp.ne.s32.totalorder %s66, %s80
      %p82 = scmp.eq.s32.totalorder %s21, 0
      %p83 = por %p81, %p82
      %s84 = ssub.s32 %s22, %s34
      %s85 = ssub.s32 %s23, %s30
      %s86 = sor.u32 %s84, %s85
      %p87 = scmp.eq.s32.totalorder %s86, 0
      %s89 = sadd.s32 %s88, 1
      %s90 = scalar_select %p87, %s88, %s89
      %p93 = pneg %p87
      %p94 = scmp.eq.s32.totalorder %s15, 1
      %p95 = por %p93, %p94
      %p96 = scmp.ne.s32.totalorder %s88, %s91
      %p97 = scmp.eq.s32.totalorder %s15, 0
      %p98 = por %p96, %p97
      %p99 = scmp.ne.s32.totalorder %s88, %s91
      %p100 = scmp.eq.s32.totalorder %s20, 1
      %p101 = por %p99, %p100
      %p102 = scmp.ne.s32.totalorder %s91, %s92
      %p103 = scmp.eq.s32.totalorder %s20, 0
      %p104 = por %p102, %p103
      %p105 = scmp.ne.s32.totalorder %s91, %s92
      %p106 = scmp.eq.s32.totalorder %s21, 1
      %p107 = por %p105, %p106
      %p109 = scmp.ne.s32.totalorder %s92, %s108
      %p110 = scmp.eq.s32.totalorder %s21, 0
      %p111 = por %p109, %p110
      %p112 = scmp.le.s32.totalorder 1, %s15
      %p113 = scmp.lt.s32.totalorder %s15, 3
      %p114 = pnand %p112, %p113
      %p115 = pneg %p114
      // Predicated region
      $region9: #{tpu_custom_call.1} parent=5 // pred_check
        _
      $region10: #{tpu_custom_call.1} parent=5 // pred_check_branch
        %117 = sbr.rel (%p114) target = $region12
      $region11: #{tpu_custom_call.1} parent=5 // pred_region
        %s118 = ssub.s32 %s15, 1
        // Predicated region
        $region13: #{tpu_custom_call.1} parent=11 // pred_check
          %p119 = pneg %p76
        $region14: #{tpu_custom_call.1} parent=11 // pred_check_branch
          %121 = sbr.rel (%p119) target = $region16
        $region15: #{tpu_custom_call.1} parent=11 // pred_region
          %123 = vsyncadd [#allocation6], 0
          %s124 = sshll.u32 %s1, 4
          %s125 = int_to_ptr.hbm [resolvable:$true] %s124
          %s126 = sshll.u32 [#allocation5], 4
          %s127 = int_to_ptr.vmem [resolvable:$true] %s126
          %132 = dma.hbm_to_vmem [thread:$0]  %s125, 768, %s127, [#allocation6], 192, 192, 12
        $region16: #{tpu_custom_call.1} parent=11 // pred_fallthru
          _
      $region12: #{tpu_custom_call.1} parent=5 // pred_fallthru
        _
      %p133 = scmp.lt.s32.totalorder %s15, 2
      // Predicated region
      $region17: #{tpu_custom_call.1} parent=5 // pred_check
        %p134 = pneg %p133
      $region18: #{tpu_custom_call.1} parent=5 // pred_check_branch
        %136 = sbr.rel (%p134) target = $region20
      $region19: #{tpu_custom_call.1} parent=5 // pred_region
        // Predicated region
        $region21: #{tpu_custom_call.1} parent=19 // pred_check
          %p137 = pneg %p49
        $region22: #{tpu_custom_call.1} parent=19 // pred_check_branch
          %139 = sbr.rel (%p137) target = $region24
        $region23: #{tpu_custom_call.1} parent=19 // pred_region
          %s140 = sand.u32 %s39, 1
          %s141 = scalar_lea.sflag [#allocation3], %s140
          %s142 = sand.u32 %s39, 1
          %s143 = smul.addr %s142, 4
          %s144 = scalar_lea.vmem [#allocation2], %s143
          %146 = vsyncadd %s141, 0
          %s147 = sadd.s32 %s23, %s22
          %s148 = smul.addr %s147, 4
          %s149 = scalar_lea.hbm %s0, %s148
          %s151 = sshll.u32 %s149, 4
          %s152 = int_to_ptr.hbm [resolvable:$true] %s151
          %s153 = sshll.u32 %s144, 4
          %s154 = int_to_ptr.vmem [resolvable:$true] %s153
          %156 = dma.hbm_to_vmem [thread:$0]  %s152, 64, %s154, %s141
        $region24: #{tpu_custom_call.1} parent=19 // pred_fallthru
          _
      $region20: #{tpu_custom_call.1} parent=5 // pred_fallthru
        _
      %p157 = scmp.le.s32.totalorder 1, %s15
      %p158 = scmp.lt.s32.totalorder %s15, 3
      %p159 = pnand %p157, %p158
      %p160 = pneg %p159
      // Predicated region
      $region25: #{tpu_custom_call.1} parent=5 // pred_check
        _
      $region26: #{tpu_custom_call.1} parent=5 // pred_check_branch
        %162 = sbr.rel (%p159) target = $region28
      $region27: #{tpu_custom_call.1} parent=5 // pred_region
        %s163 = ssub.s32 %s15, 1
        %s164 = sand.u32 %s42, 1
        %s165 = scalar_lea.sflag [#allocation3], %s164
        %s166 = sand.u32 %s42, 1
        %s167 = smul.addr %s166, 4
        %s168 = scalar_lea.vmem [#allocation2], %s167
        // Predicated region
        $region29: #{tpu_custom_call.1} parent=27 // pred_check
          %p169 = pneg %p55
        $region30: #{tpu_custom_call.1} parent=27 // pred_check_branch
          %171 = sbr.rel (%p169) target = $region32
        $region31: #{tpu_custom_call.1} parent=27 // pred_region
          %173 = dma.done %s165, 64
        $region32: #{tpu_custom_call.1} parent=27 // pred_fallthru
          _
        // Predicated region
        $region33: #{tpu_custom_call.1} parent=27 // pred_check
          %p174 = pneg %p76
        $region34: #{tpu_custom_call.1} parent=27 // pred_check_branch
          %176 = sbr.rel (%p174) target = $region36
        $region35: #{tpu_custom_call.1} parent=27 // pred_region
          %178 = dma.done [#allocation6], 768
        $region36: #{tpu_custom_call.1} parent=27 // pred_fallthru
          _
        %s179 = sand.u32 %s42, 1
        %s180 = scalar_lea.sflag [#allocation3], %s179
        %s181 = sand.u32 %s42, 1
        %s182 = smul.addr %s181, 4
        %s183 = scalar_lea.vmem [#allocation2], %s182
        %p184 = pneg %p55
        %p185 = pneg %p52
        %p186 = pneg %p76
        %p187 = pneg %p73
        %p188 = pneg %p104
        %p189 = pneg %p101
        %s190 = sand.u32 %s91, 1
        %s191 = scalar_lea.sflag [#allocation4], %s190
        %s192 = sand.u32 %s91, 1
        %s193 = smul.addr %s192, 12
        %s194 = scalar_lea.vmem [#allocation7], %s193
        %v196 = vld [vmem:[%s168] sm:$0xf]
        %v197 = vld [vmem:[#allocation5] sm:$0xff]
        %v198 = vld [vmem:[#allocation5 + $0x8] sm:$0xf]
        %v199 = vld [vmem:[#allocation5 + $0xc] sm:$0xff]
        %v200 = vld [vmem:[#allocation5 + $0x14] sm:$0xf]
        %v201 = vld [vmem:[#allocation5 + $0x18] sm:$0xff]
        %v202 = vld [vmem:[#allocation5 + $0x20] sm:$0xf]
        %v203 = vld [vmem:[#allocation5 + $0x24] sm:$0xff]
        %v204 = vld [vmem:[#allocation5 + $0x2c] sm:$0xf]
        %v213 = vunpack.c.l.b16 %v197
        %v214 = vunpack.c.h.b16 %v197
        %v215 = vunpack.c.l.b16 %v198
        %v216 = vunpack.c.l.b16 %v199
        %v217 = vunpack.c.h.b16 %v199
        %v218 = vunpack.c.l.b16 %v200
        %v219 = vunpack.c.l.b16 %v201
        %v220 = vunpack.c.h.b16 %v201
        %v221 = vunpack.c.l.b16 %v202
        %v222 = vunpack.c.l.b16 %v203
        %v223 = vunpack.c.h.b16 %v203
        %v224 = vunpack.c.l.b16 %v204
        %v225 = vpack.c.b16 %v216, %v213
        %v226 = vpack.c.b16 %v217, %v214
        %v227 = vpack.c.b16 %v218, %v215
        %v228 = vpack.c.b16 %v222, %v219
        %v229 = vpack.c.b16 %v223, %v220
        %v230 = vpack.c.b16 %v224, %v221
        %vm237 = vcmask 261120
        %v239 = vsel %vm237, %v196, 0
        %241 = vmatpush.bf16.msra.mxu0 0
        %242 = vmatpush.bf16.msra.mxu0 0
        %243 = vmatpush.bf16.msra.mxu0 0
        %244 = vmatpush.bf16.msra.mxu0 0
        %245 = vmatpush.bf16.msra.mxu0 0
        %246 = vmatpush.bf16.msra.mxu0 0
        %247 = vmatpush.bf16.msra.mxu0 %v228
        %248 = vmatpush.bf16.msra.mxu0 %v225
        %249 = vmatmul.bf16.gmra.mxu0 %v239
        %v250 = vpop.f32.mrf.mxu0
        %v251 = vadd.f32 0.0, %v250
        %v252 = vpop.f32.mrf.mxu0
        %253 = vdwg.mxu0
        %254 = vmatpush.bf16.msra.mxu0 0
        %255 = vmatpush.bf16.msra.mxu0 0
        %256 = vmatpush.bf16.msra.mxu0 0
        %257 = vmatpush.bf16.msra.mxu0 0
        %258 = vmatpush.bf16.msra.mxu0 0
        %259 = vmatpush.bf16.msra.mxu0 0
        %260 = vmatpush.bf16.msra.mxu0 %v229
        %261 = vmatpush.bf16.msra.mxu0 %v226
        %262 = vmatmul.bf16.gmra.mxu0 %v239
        %v263 = vpop.f32.mrf.mxu0
        %v264 = vadd.f32 0.0, %v263
        %v265 = vpop.f32.mrf.mxu0
        %266 = vdwg.mxu0
        %267 = vmatpush.bf16.msra.mxu0 0
        %268 = vmatpush.bf16.msra.mxu0 0
        %269 = vmatpush.bf16.msra.mxu0 0
        %270 = vmatpush.bf16.msra.mxu0 0
        %271 = vmatpush.bf16.msra.mxu0 0
        %272 = vmatpush.bf16.msra.mxu0 0
        %273 = vmatpush.bf16.msra.mxu0 %v230
        %274 = vmatpush.bf16.msra.mxu0 %v227
        %275 = vmatmul.bf16.gmra.mxu0 %v239
        %v276 = vpop.f32.mrf.mxu0
        %v277 = vadd.f32 0.0, %v276
        %v278 = vpop.f32.mrf.mxu0
        %279 = vdwg.mxu0
        %v280 = vpack.c.bf16 %v264, %v251
        %v281 = vpack.c.bf16 %v277, %v277
        %282 = vst [vmem:[%s194] sm:$0xff] %v280
        %283 = vst [vmem:[%s194 + $0x8] sm:$0xf] %v281
        %s284 = sand.u32 %s91, 1
        %s285 = scalar_lea.sflag [#allocation4], %s284
        %s286 = sand.u32 %s91, 1
        %s287 = smul.addr %s286, 12
        %s288 = scalar_lea.vmem [#allocation7], %s287
        // Predicated region
        $region37: #{tpu_custom_call.1} parent=27 // pred_check
          %p289 = pneg %p101
        $region38: #{tpu_custom_call.1} parent=27 // pred_check_branch
          %291 = sbr.rel (%p289) target = $region40
        $region39: #{tpu_custom_call.1} parent=27 // pred_region
          %293 = vsyncadd %s285, 0
          %s294 = smul.addr %s25, 3
          %s295 = smul.addr %s24, 3
          %s296 = sadd.s32 %s294, %s295
          %s297 = smul.addr %s296, 4
          %s298 = scalar_lea.hbm %s2, %s297
          %s300 = sshll.u32 %s288, 4
          %s301 = int_to_ptr.vmem [resolvable:$true] %s300
          %s302 = sshll.u32 %s298, 4
          %s303 = int_to_ptr.hbm [resolvable:$true] %s302
          %305 = dma.vmem_to_hbm [thread:$0]  %s301, 192, %s303, %s285
        $region40: #{tpu_custom_call.1} parent=27 // pred_fallthru
          _
      $region28: #{tpu_custom_call.1} parent=5 // pred_fallthru
        _
      %p306 = scmp.le.s32.totalorder 2, %s15
      // Predicated region
      $region41: #{tpu_custom_call.1} parent=5 // pred_check
        %p307 = pneg %p306
      $region42: #{tpu_custom_call.1} parent=5 // pred_check_branch
        %309 = sbr.rel (%p307) target = $region44
      $region43: #{tpu_custom_call.1} parent=5 // pred_region
        %s310 = ssub.s32 %s15, 2
        // Predicated region
        $region45: #{tpu_custom_call.1} parent=43 // pred_check
          %p311 = pneg %p107
        $region46: #{tpu_custom_call.1} parent=43 // pred_check_branch
          %313 = sbr.rel (%p311) target = $region48
        $region47: #{tpu_custom_call.1} parent=43 // pred_region
          %s314 = sand.u32 %s92, 1
          %s315 = scalar_lea.sflag [#allocation4], %s314
          %s316 = sand.u32 %s92, 1
          %s317 = smul.addr %s316, 12
          %s318 = scalar_lea.vmem [#allocation7], %s317
          %320 = dma.done %s315, 192
        $region48: #{tpu_custom_call.1} parent=43 // pred_fallthru
          _
      $region44: #{tpu_custom_call.1} parent=5 // pred_fallthru
        _
    $region6: #{tpu_custom_call.1} parent=1 // loop_footer
      %s19 = sadd.s32 1, %s15
    $region7: #{tpu_custom_call.1} parent=1 // loop_footer_branch
      %14 = sbr.rel target = $region3
    $region8: #{tpu_custom_call.1} parent=1 // loop_exit
      _
    %321 = vsyncpa [#allocation3], 1
    %s322 = scalar_lea.sflag [#allocation3], 1
    %323 = vsyncpa %s322, 1
    %324 = vsyncpa [#allocation6], 1
    %325 = vsyncpa [#allocation4], 1
    %s326 = scalar_lea.sflag [#allocation4], 1
    %327 = vsyncpa %s326, 1

</llo_original>
